<compile_context>
chip_gen: v6e
topology: v6e:2x2x1
jax: 0.10.0
libtpu: 0.0.40
codegen_flags: <defaults>
</compile_context>

<pallas_src>
import math
import jax
import jax.numpy as jnp
from jax.experimental import pallas as pl
from jax.experimental.pallas import tpu as pltpu

H_DIM = 128


def _round_up(x, m):
    return ((x + m - 1) // m) * m


def dis_kernel(x_ref, w1_ref, b1_ref, w2_ref, b2_ref, o_ref):
    # Layer 1 on the MXU: bf16 x bf16 -> f32 accumulate, bias + ReLU in f32.
    h = jnp.dot(x_ref[...], w1_ref[...], preferred_element_type=jnp.float32)
    h = jnp.maximum(h + b1_ref[...], 0.0)                      # (tb, 128) f32

    # Layer 2 has N=1 -> do it on the VPU/XLU instead of wasting an MXU pass:
    # (tb, 128) * (1, 128) -> lane-reduce -> (tb,)
    logit = jnp.sum(h * w2_ref[...], axis=-1) + b2_ref[0]
    prob = jax.nn.sigmoid(logit)

    # Lane-dense store: o_ref is (1, 1, tb).
    o_ref[...] = prob.reshape(o_ref.shape).astype(o_ref.dtype)


def dis_forward(x_flat, w1, b1, w2, b2, *, tb=256):
    """x_flat: (B, X_dim) float32.  Returns (B, 1) float32 probabilities."""
    B, X_dim = x_flat.shape

    # Pick the batch tile: single padded block for small B, 256-row tiles else.
    if B <= 512:
        tb_eff = _round_up(B, 16)          # 16 keeps bf16 sublane packing happy
    else:
        tb_eff = tb
    B_pad = _round_up(B, tb_eff)
    grid_n = B_pad // tb_eff

    if B_pad != B:
        x_flat = jnp.pad(x_flat, ((0, B_pad - B), (0, 0)))

    # bf16 inputs for the big matmul (accumulation stays f32 in-kernel).
    x_bf16 = x_flat.astype(jnp.bfloat16)
    w1_bf16 = w1.astype(jnp.bfloat16)
    b1_row = b1.reshape(1, H_DIM).astype(jnp.float32)
    w2_row = w2.reshape(1, H_DIM).astype(jnp.float32)   # second layer as a row
    b2_s = b2.reshape(1).astype(jnp.float32)            # scalar, lives in SMEM

    out = pl.pallas_call(
        dis_kernel,
        out_shape=jax.ShapeDtypeStruct((grid_n, 1, tb_eff), jnp.float32),
        grid_spec=pltpu.PrefetchScalarGridSpec(
            num_scalar_prefetch=0,
            grid=(grid_n,),
            in_specs=[
                pl.BlockSpec((tb_eff, X_dim), lambda i: (i, 0)),    # x tile
                pl.BlockSpec((X_dim, H_DIM), lambda i: (0, 0)),     # W1 (resident)
                pl.BlockSpec((1, H_DIM), lambda i: (0, 0)),         # b1
                pl.BlockSpec((1, H_DIM), lambda i: (0, 0)),         # w2 row
                pl.BlockSpec(memory_space=pltpu.MemorySpace.SMEM),  # b2 scalar
            ],
            out_specs=pl.BlockSpec((1, 1, tb_eff), lambda i: (i, 0, 0)),
        ),
        compiler_params=pltpu.CompilerParams(
            dimension_semantics=("parallel",),
        ),
    )(x_bf16, w1_bf16, b1_row, w2_row, b2_s)

    # (grid_n, 1, tb_eff) -> (B_pad, 1) -> drop padding rows.
    return out.reshape(B_pad, 1)[:B]


def init_dis_params(key, x_dim):
    """Deterministic init mimicking PyTorch nn.Linear defaults
    (uniform(-1/sqrt(fan_in), 1/sqrt(fan_in)))."""
    k1, k2, k3, k4 = jax.random.split(key, 4)
    bound1 = 1.0 / math.sqrt(x_dim)
    bound2 = 1.0 / math.sqrt(H_DIM)
    # Stored as (in_features, out_features) == PyTorch weight.T
    w1 = jax.random.uniform(k1, (x_dim, H_DIM), jnp.float32, -bound1, bound1)
    b1 = jax.random.uniform(k2, (H_DIM,), jnp.float32, -bound1, bound1)
    w2 = jax.random.uniform(k3, (H_DIM, 1), jnp.float32, -bound2, bound2)
    b2 = jax.random.uniform(k4, (1,), jnp.float32, -bound2, bound2)
    return w1, b1, w2, b2


def reference_forward_f32(x_flat, w1, b1, w2, b2):
    h = jnp.maximum(x_flat @ w1 + b1, 0.0)
    return jax.nn.sigmoid(h @ w2 + b2)


def reference_forward_bf16(x_flat, w1, b1, w2, b2):
    # Same mixed precision as the kernel (bf16 matmul, f32 accumulation).
    h = jnp.dot(x_flat.astype(jnp.bfloat16), w1.astype(jnp.bfloat16),
                preferred_element_type=jnp.float32)
    h = jnp.maximum(h + b1, 0.0)
    return jax.nn.sigmoid(h @ w2 + b2)


if __name__ == "__main__":
    key = jax.random.PRNGKey(0)
    k_img, k_params = jax.random.split(key)

    # Small image batch consistent with the GAN setup: NCHW = (2, 4, 16, 16)
    B, C, H, W = 2, 4, 16, 16
    imgs = jax.random.normal(k_img, (B, C, H, W), jnp.float32)
    x_flat = imgs.reshape(B, -1)            # (2, 1024); X_dim = 1024
    X_dim = x_flat.shape[1]

    w1, b1, w2, b2 = init_dis_params(k_params, X_dim)

    out = dis_forward(x_flat, w1, b1, w2, b2)
    out = jax.block_until_ready(out)
    assert out.shape == (B, 1)

    # Strict check against a reference using the same mixed precision.
    ref_bf16 = jax.block_until_ready(reference_forward_bf16(x_flat, w1, b1, w2, b2))
    assert jnp.allclose(out, ref_bf16, atol=1e-4, rtol=1e-4), "mismatch vs bf16 reference"

    # Loose semantic check against the full-f32 PyTorch-equivalent forward.
    ref_f32 = jax.block_until_ready(reference_forward_f32(x_flat, w1, b1, w2, b2))
    assert jnp.allclose(out, ref_f32, atol=5e-3, rtol=5e-3), "mismatch vs f32 reference"

    print("KERNEL_OK")
</pallas_src>

<mosaic_0001>
module attributes {stable_mosaic.version = 11 : i64} {
  func.func @dis_kernel(%arg0: i32, %arg1: memref<16x1024xbf16, #tpu.memory_space<vmem>>, %arg2: memref<1024x128xbf16, #tpu.memory_space<vmem>>, %arg3: memref<1x128xf32, #tpu.memory_space<vmem>>, %arg4: memref<1x128xf32, #tpu.memory_space<vmem>>, %arg5: memref<1xf32, #tpu.memory_space<smem>>, %arg6: memref<1x1x16xf32, #tpu.memory_space<vmem>>) attributes {dimension_semantics = [#tpu.dimension_semantics<parallel>], iteration_bounds = array<i64: 1>, scalar_prefetch = 0 : i64, scratch_operands = 0 : i64, tpu.core_type = #tpu.core_type<tc>, window_params = [{transform_indices = @transform_0, window_bounds = array<i64: 16, 1024>}, {pipeline_mode = #tpu.pipeline_mode<synchronous>, transform_indices = @transform_1, window_bounds = array<i64: 1024, 128>}, {pipeline_mode = #tpu.pipeline_mode<synchronous>, transform_indices = @transform_2, window_bounds = array<i64: 1, 128>}, {pipeline_mode = #tpu.pipeline_mode<synchronous>, transform_indices = @transform_3, window_bounds = array<i64: 1, 128>}, {transform_indices = @transform_4, window_bounds = array<i64: 1>}, {transform_indices = @transform_5, window_bounds = array<i64: 1, 1, 16>}]} {
    %c0 = arith.constant 0 : index
    %c0_0 = arith.constant 0 : index
    %0 = vector.load %arg1[%c0, %c0_0] : memref<16x1024xbf16, #tpu.memory_space<vmem>>, vector<16x1024xbf16>
    %c0_1 = arith.constant 0 : index
    %c0_2 = arith.constant 0 : index
    %1 = vector.load %arg2[%c0_1, %c0_2] : memref<1024x128xbf16, #tpu.memory_space<vmem>>, vector<1024x128xbf16>
    %cst = arith.constant dense<0.000000e+00> : vector<16x128xf32>
    %2 = tpu.matmul %0, %1, %cst {dimension_numbers = #tpu.dot_dimension_numbers<[1], [0], [0], [1], [0, 0, 1, 1], [], []>} : vector<16x1024xbf16>, vector<1024x128xbf16>, vector<16x128xf32> -> vector<16x128xf32>
    %c0_3 = arith.constant 0 : index
    %c0_4 = arith.constant 0 : index
    %3 = vector.load %arg3[%c0_3, %c0_4] : memref<1x128xf32, #tpu.memory_space<vmem>>, vector<1x128xf32>
    %4 = vector.broadcast %3 : vector<1x128xf32> to vector<16x128xf32>
    %5 = arith.addf %2, %4 : vector<16x128xf32>
    %cst_5 = arith.constant 0.000000e+00 : f32
    %6 = vector.broadcast %cst_5 : f32 to vector<16x128xf32>
    %7 = arith.maximumf %5, %6 : vector<16x128xf32>
    %c0_6 = arith.constant 0 : index
    %c0_7 = arith.constant 0 : index
    %8 = vector.load %arg4[%c0_6, %c0_7] : memref<1x128xf32, #tpu.memory_space<vmem>>, vector<1x128xf32>
    %9 = vector.broadcast %8 : vector<1x128xf32> to vector<16x128xf32>
    %10 = arith.mulf %7, %9 : vector<16x128xf32>
    %cst_8 = arith.constant dense<0.000000e+00> : vector<16xf32>
    %11 = vector.multi_reduction <add>, %10, %cst_8 [1] : vector<16x128xf32> to vector<16xf32>
    %c0_9 = arith.constant 0 : index
    %12 = memref.load %arg5[%c0_9] : memref<1xf32, #tpu.memory_space<smem>>
    %13 = vector.broadcast %12 : f32 to vector<16xf32>
    %14 = arith.addf %11, %13 : vector<16xf32>
    %15 = arith.negf %14 : vector<16xf32>
    %16 = math.exp %15 : vector<16xf32>
    %cst_10 = arith.constant 1.000000e+00 : f32
    %17 = vector.broadcast %cst_10 : f32 to vector<16xf32>
    %18 = arith.addf %17, %16 : vector<16xf32>
    %19 = arith.divf %17, %18 : vector<16xf32>
    %20 = vector.shape_cast %19 : vector<16xf32> to vector<1x1x16xf32>
    %c0_11 = arith.constant 0 : index
    %c0_12 = arith.constant 0 : index
    %c0_13 = arith.constant 0 : index
    %21 = vector.load %arg6[%c0_11, %c0_12, %c0_13] : memref<1x1x16xf32, #tpu.memory_space<vmem>>, vector<1x1x16xf32>
    tpu.vector_store %arg6[%c0_11, %c0_12, %c0_13], %20 {strides = array<i32>} : memref<1x1x16xf32, #tpu.memory_space<vmem>>, vector<1x1x16xf32>,
    return
  }
  func.func @transform_0(%arg0: i32) -> (i32, i32) {
    %c0_i32 = arith.constant 0 : i32
    %c0_i32_0 = arith.constant 0 : i32
    return %arg0, %c0_i32 : i32, i32
  }
  func.func @transform_1(%arg0: i32) -> (i32, i32) {
    %c0_i32 = arith.constant 0 : i32
    %c0_i32_0 = arith.constant 0 : i32
    %c0_i32_1 = arith.constant 0 : i32
    return %c0_i32, %c0_i32_0 : i32, i32
  }
  func.func @transform_2(%arg0: i32) -> (i32, i32) {
    %c0_i32 = arith.constant 0 : i32
    %c0_i32_0 = arith.constant 0 : i32
    %c0_i32_1 = arith.constant 0 : i32
    return %c0_i32, %c0_i32_0 : i32, i32
  }
  func.func @transform_3(%arg0: i32) -> (i32, i32) {
    %c0_i32 = arith.constant 0 : i32
    %c0_i32_0 = arith.constant 0 : i32
    %c0_i32_1 = arith.constant 0 : i32
    return %c0_i32, %c0_i32_0 : i32, i32
  }
  func.func @transform_4(%arg0: i32) -> i32 {
    %c0_i32 = arith.constant 0 : i32
    %c0_i32_0 = arith.constant 0 : i32
    return %c0_i32 : i32
  }
  func.func @transform_5(%arg0: i32) -> (i32, i32, i32) {
    %c0_i32 = arith.constant 0 : i32
    %c0_i32_0 = arith.constant 0 : i32
    %c0_i32_1 = arith.constant 0 : i32
    return %arg0, %c0_i32, %c0_i32_0 : i32, i32, i32
  }
}

</mosaic_0001>

<llo_original>
// kernel: tpu_custom_call.1
$region0: #{tpu_custom_call.1}
  #allocation0 [shape = 'u32[]', space=smem, size = 0x4, offset = 0x4, fixed_abs, tag = 'smem constant byte address 0x4 - core index']
  #allocation1 [shape = 'u32[144,128]{1,0:T(1,128)}', space=vmem, size = 0x12000, scoped, tag = 'internal scratch']
  #allocation2 [shape = 'f32[1]{0:T(128)S(6)}', space=smem, size = 0x200, scoped, tag = 'scoped memory for tpu_custom_call.1']
  %s0 = inlined_call_operand.hbm [shape: bf16[16,1024], index: 0, kind: input, shape index: {}]
  %s1 = inlined_call_operand.hbm [shape: bf16[1024,128], index: 1, kind: input, shape index: {}]
  %s2 = inlined_call_operand.vmem [shape: f32[1,128], index: 2, kind: input, shape index: {}]
  %s3 = inlined_call_operand.vmem [shape: f32[1,128], index: 3, kind: input, shape index: {}]
  %s4 = inlined_call_operand.<no memory space> [shape: f32[1], index: 4, kind: input, shape index: {}]
  %s5 = inlined_call_operand.hbm [shape: f32[1,1,16], index: 5, kind: output, shape index: {}]
  %s6 = sld [smem:[#allocation0]]
  $region38: #{tpu_custom_call.1} parent=0
    _
  %s8 = ssub.s32 1, %s6
  %s9 = scalar_select 0, %s8, %s6
  %10 = sst [smem:[#allocation2]] %s4
  $region1: #{tpu_custom_call.1} parent=0
    #allocation3 [shape = 'u8[32768]{0}', space=vmem, size = 0x8000, scoped, tag = 'input window, operand 0, single buffered']
    #allocation4 [shape = 's32[1]{0}', space=sflag, size = 0x4, scoped, tag = 'scoped memory for tpu_custom_call.1']
    #allocation5 [shape = 's32[1]{0}', space=sflag, size = 0x4, scoped, tag = 'scoped memory for tpu_custom_call.1']
    #allocation6 [shape = 'u8[262144]{0}', space=vmem, size = 0x40000, scoped, tag = 'input window, operand 1, single buffered']
    #allocation7 [shape = 's32[1]{0}', space=sflag, size = 0x4, scoped, tag = 'scoped memory for tpu_custom_call.1']
    #allocation8 [shape = 'u8[512]{0}', space=vmem, size = 0x400, scoped, tag = 'output window, operand 0, single buffered']
    %11 = vsyncpa [#allocation4], 0
    %12 = vsyncpa [#allocation7], 0
    %13 = vsyncpa [#allocation5], 0
    // Predicated region
    $region2: #{tpu_custom_call.1} parent=1 // pred_check
      _
    $region3: #{tpu_custom_call.1} parent=1 // pred_check_branch
      %15 = sbr.rel (0) target = $region5
    $region4: #{tpu_custom_call.1} parent=1 // pred_region
      %s17 = ssub.s32 1024, 1024
      %18 = vsyncadd [#allocation4], %s17
      %s19 = sshll.u32 [#allocation3], 4
      %s20 = int_to_ptr.vmem [resolvable:$true] %s19
      %25 = dma.hbm_to_vmem [thread:$0]  %s0, 1024, %s20, [#allocation4], 512, 512, 32
    $region5: #{tpu_custom_call.1} parent=1 // pred_fallthru
      _
    // Predicated region
    $region6: #{tpu_custom_call.1} parent=1 // pred_check
      _
    $region7: #{tpu_custom_call.1} parent=1 // pred_check_branch
      %27 = sbr.rel (0) target = $region9
    $region8: #{tpu_custom_call.1} parent=1 // pred_region
      %s29 = ssub.s32 8192, 8192
      %30 = vsyncadd [#allocation7], %s29
      %s31 = sshll.u32 [#allocation6], 4
      %s32 = int_to_ptr.vmem [resolvable:$true] %s31
      %37 = dma.hbm_to_vmem [thread:$0]  %s1, 8192, %s32, [#allocation7], 64, 64, 4
    $region9: #{tpu_custom_call.1} parent=1 // pred_fallthru
      _
    // Predicated region
    $region10: #{tpu_custom_call.1} parent=1 // pred_check
      _
    $region11: #{tpu_custom_call.1} parent=1 // pred_check_branch
      %39 = sbr.rel (0) target = $region13
    $region12: #{tpu_custom_call.1} parent=1 // pred_region
      _
    $region13: #{tpu_custom_call.1} parent=1 // pred_fallthru
      _
    // Predicated region
    $region14: #{tpu_custom_call.1} parent=1 // pred_check
      _
    $region15: #{tpu_custom_call.1} parent=1 // pred_check_branch
      %41 = sbr.rel (0) target = $region17
    $region16: #{tpu_custom_call.1} parent=1 // pred_region
      _
    $region17: #{tpu_custom_call.1} parent=1 // pred_fallthru
      _
    // Predicated region
    $region18: #{tpu_custom_call.1} parent=1 // pred_check
      _
    $region19: #{tpu_custom_call.1} parent=1 // pred_check_branch
      %43 = sbr.rel (0) target = $region21
    $region20: #{tpu_custom_call.1} parent=1 // pred_region
      _
    $region21: #{tpu_custom_call.1} parent=1 // pred_fallthru
      _
    // Predicated region
    $region22: #{tpu_custom_call.1} parent=1 // pred_check
      _
    $region23: #{tpu_custom_call.1} parent=1 // pred_check_branch
      %45 = sbr.rel (0) target = $region25
    $region24: #{tpu_custom_call.1} parent=1 // pred_region
      %46 = dma.done [#allocation4], 1024
    $region25: #{tpu_custom_call.1} parent=1 // pred_fallthru
      _
    // Predicated region
    $region26: #{tpu_custom_call.1} parent=1 // pred_check
      _
    $region27: #{tpu_custom_call.1} parent=1 // pred_check_branch
      %48 = sbr.rel (0) target = $region29
    $region28: #{tpu_custom_call.1} parent=1 // pred_region
      %49 = dma.done [#allocation7], 8192
    $region29: #{tpu_custom_call.1} parent=1 // pred_fallthru
      _
    %v51 = vld [vmem:[#allocation3] sm:$0xff]
    %v52 = vld [vmem:[#allocation3 + $0x8] sm:$0xff]
    %v53 = vld [vmem:[#allocation3 + $0x10] sm:$0xff]
    %v54 = vld [vmem:[#allocation3 + $0x18] sm:$0xff]
    %v55 = vld [vmem:[#allocation3 + $0x20] sm:$0xff]
    %v56 = vld [vmem:[#allocation3 + $0x28] sm:$0xff]
    %v57 = vld [vmem:[#allocation3 + $0x30] sm:$0xff]
    %v58 = vld [vmem:[#allocation3 + $0x38] sm:$0xff]
    %v59 = vld [vmem:[#allocation6] sm:$0xf]
    %v60 = vld [vmem:[#allocation6 + $0x4] sm:$0xf]
    %v61 = vld [vmem:[#allocation6 + $0x8] sm:$0xf]
    %v62 = vld [vmem:[#allocation6 + $0xc] sm:$0xf]
    %v63 = vld [vmem:[#allocation6 + $0x10] sm:$0xf]
    %v64 = vld [vmem:[#allocation6 + $0x14] sm:$0xf]
    %v65 = vld [vmem:[#allocation6 + $0x18] sm:$0xf]
    %v66 = vld [vmem:[#allocation6 + $0x1c] sm:$0xf]
    %v67 = vld [vmem:[#allocation6 + $0x20] sm:$0xf]
    %v68 = vld [vmem:[#allocation6 + $0x24] sm:$0xf]
    %v69 = vld [vmem:[#allocation6 + $0x28] sm:$0xf]
    %v70 = vld [vmem:[#allocation6 + $0x2c] sm:$0xf]
    %v71 = vld [vmem:[#allocation6 + $0x30] sm:$0xf]
    %v72 = vld [vmem:[#allocation6 + $0x34] sm:$0xf]
    %v73 = vld [vmem:[#allocation6 + $0x38] sm:$0xf]
    %v74 = vld [vmem:[#allocation6 + $0x3c] sm:$0xf]
    %v75 = vld [vmem:[#allocation6 + $0x40] sm:$0xf]
    %v76 = vld [vmem:[#allocation6 + $0x44] sm:$0xf]
    %v77 = vld [vmem:[#allocation6 + $0x48] sm:$0xf]
    %v78 = vld [vmem:[#allocation6 + $0x4c] sm:$0xf]
    %v79 = vld [vmem:[#allocation6 + $0x50] sm:$0xf]
    %v80 = vld [vmem:[#allocation6 + $0x54] sm:$0xf]
    %v81 = vld [vmem:[#allocation6 + $0x58] sm:$0xf]
    %v82 = vld [vmem:[#allocation6 + $0x5c] sm:$0xf]
    %v83 = vld [vmem:[#allocation6 + $0x60] sm:$0xf]
    %v84 = vld [vmem:[#allocation6 + $0x64] sm:$0xf]
    %v85 = vld [vmem:[#allocation6 + $0x68] sm:$0xf]
    %v86 = vld [vmem:[#allocation6 + $0x6c] sm:$0xf]
    %v87 = vld [vmem:[#allocation6 + $0x70] sm:$0xf]
    %v88 = vld [vmem:[#allocation6 + $0x74] sm:$0xf]
    %v89 = vld [vmem:[#allocation6 + $0x78] sm:$0xf]
    %v90 = vld [vmem:[#allocation6 + $0x7c] sm:$0xf]
    %v91 = vld [vmem:[#allocation6 + $0x80] sm:$0xf]
    %v92 = vld [vmem:[#allocation6 + $0x84] sm:$0xf]
    %v93 = vld [vmem:[#allocation6 + $0x88] sm:$0xf]
    %v94 = vld [vmem:[#allocation6 + $0x8c] sm:$0xf]
    %v95 = vld [vmem:[#allocation6 + $0x90] sm:$0xf]
    %v96 = vld [vmem:[#allocation6 + $0x94] sm:$0xf]
    %v97 = vld [vmem:[#allocation6 + $0x98] sm:$0xf]
    %v98 = vld [vmem:[#allocation6 + $0x9c] sm:$0xf]
    %v99 = vld [vmem:[#allocation6 + $0xa0] sm:$0xf]
    %v100 = vld [vmem:[#allocation6 + $0xa4] sm:$0xf]
    %v101 = vld [vmem:[#allocation6 + $0xa8] sm:$0xf]
    %v102 = vld [vmem:[#allocation6 + $0xac] sm:$0xf]
    %v103 = vld [vmem:[#allocation6 + $0xb0] sm:$0xf]
    %v104 = vld [vmem:[#allocation6 + $0xb4] sm:$0xf]
    %v105 = vld [vmem:[#allocation6 + $0xb8] sm:$0xf]
    %v106 = vld [vmem:[#allocation6 + $0xbc] sm:$0xf]
    %v107 = vld [vmem:[#allocation6 + $0xc0] sm:$0xf]
    %v108 = vld [vmem:[#allocation6 + $0xc4] sm:$0xf]
    %v109 = vld [vmem:[#allocation6 + $0xc8] sm:$0xf]
    %v110 = vld [vmem:[#allocation6 + $0xcc] sm:$0xf]
    %v111 = vld [vmem:[#allocation6 + $0xd0] sm:$0xf]
    %v112 = vld [vmem:[#allocation6 + $0xd4] sm:$0xf]
    %v113 = vld [vmem:[#allocation6 + $0xd8] sm:$0xf]
    %v114 = vld [vmem:[#allocation6 + $0xdc] sm:$0xf]
    %v115 = vld [vmem:[#allocation6 + $0xe0] sm:$0xf]
    %v116 = vld [vmem:[#allocation6 + $0xe4] sm:$0xf]
    %v117 = vld [vmem:[#allocation6 + $0xe8] sm:$0xf]
    %v118 = vld [vmem:[#allocation6 + $0xec] sm:$0xf]
    %v119 = vld [vmem:[#allocation6 + $0xf0] sm:$0xf]
    %v120 = vld [vmem:[#allocation6 + $0xf4] sm:$0xf]
    %v121 = vld [vmem:[#allocation6 + $0xf8] sm:$0xf]
    %v122 = vld [vmem:[#allocation6 + $0xfc] sm:$0xf]
    %v123 = vld [vmem:[#allocation6 + $0x100] sm:$0xf]
    %v124 = vld [vmem:[#allocation6 + $0x104] sm:$0xf]
    %v125 = vld [vmem:[#allocation6 + $0x108] sm:$0xf]
    %v126 = vld [vmem:[#allocation6 + $0x10c] sm:$0xf]
    %v127 = vld [vmem:[#allocation6 + $0x110] sm:$0xf]
    %v128 = vld [vmem:[#allocation6 + $0x114] sm:$0xf]
    %v129 = vld [vmem:[#allocation6 + $0x118] sm:$0xf]
    %v130 = vld [vmem:[#allocation6 + $0x11c] sm:$0xf]
    %v131 = vld [vmem:[#allocation6 + $0x120] sm:$0xf]
    %v132 = vld [vmem:[#allocation6 + $0x124] sm:$0xf]
    %v133 = vld [vmem:[#allocation6 + $0x128] sm:$0xf]
    %v134 = vld [vmem:[#allocation6 + $0x12c] sm:$0xf]
    %v135 = vld [vmem:[#allocation6 + $0x130] sm:$0xf]
    %v136 = vld [vmem:[#allocation6 + $0x134] sm:$0xf]
    %v137 = vld [vmem:[#allocation6 + $0x138] sm:$0xf]
    %v138 = vld [vmem:[#allocation6 + $0x13c] sm:$0xf]
    %v139 = vld [vmem:[#allocation6 + $0x140] sm:$0xf]
    %v140 = vld [vmem:[#allocation6 + $0x144] sm:$0xf]
    %v141 = vld [vmem:[#allocation6 + $0x148] sm:$0xf]
    %v142 = vld [vmem:[#allocation6 + $0x14c] sm:$0xf]
    %v143 = vld [vmem:[#allocation6 + $0x150] sm:$0xf]
    %v144 = vld [vmem:[#allocation6 + $0x154] sm:$0xf]
    %v145 = vld [vmem:[#allocation6 + $0x158] sm:$0xf]
    %v146 = vld [vmem:[#allocation6 + $0x15c] sm:$0xf]
    %v147 = vld [vmem:[#allocation6 + $0x160] sm:$0xf]
    %v148 = vld [vmem:[#allocation6 + $0x164] sm:$0xf]
    %v149 = vld [vmem:[#allocation6 + $0x168] sm:$0xf]
    %v150 = vld [vmem:[#allocation6 + $0x16c] sm:$0xf]
    %v151 = vld [vmem:[#allocation6 + $0x170] sm:$0xf]
    %v152 = vld [vmem:[#allocation6 + $0x174] sm:$0xf]
    %v153 = vld [vmem:[#allocation6 + $0x178] sm:$0xf]
    %v154 = vld [vmem:[#allocation6 + $0x17c] sm:$0xf]
    %v155 = vld [vmem:[#allocation6 + $0x180] sm:$0xf]
    %v156 = vld [vmem:[#allocation6 + $0x184] sm:$0xf]
    %v157 = vld [vmem:[#allocation6 + $0x188] sm:$0xf]
    %v158 = vld [vmem:[#allocation6 + $0x18c] sm:$0xf]
    %v159 = vld [vmem:[#allocation6 + $0x190] sm:$0xf]
    %v160 = vld [vmem:[#allocation6 + $0x194] sm:$0xf]
    %v161 = vld [vmem:[#allocation6 + $0x198] sm:$0xf]
    %v162 = vld [vmem:[#allocation6 + $0x19c] sm:$0xf]
    %v163 = vld [vmem:[#allocation6 + $0x1a0] sm:$0xf]
    %v164 = vld [vmem:[#allocation6 + $0x1a4] sm:$0xf]
    %v165 = vld [vmem:[#allocation6 + $0x1a8] sm:$0xf]
    %v166 = vld [vmem:[#allocation6 + $0x1ac] sm:$0xf]
    %v167 = vld [vmem:[#allocation6 + $0x1b0] sm:$0xf]
    %v168 = vld [vmem:[#allocation6 + $0x1b4] sm:$0xf]
    %v169 = vld [vmem:[#allocation6 + $0x1b8] sm:$0xf]
    %v170 = vld [vmem:[#allocation6 + $0x1bc] sm:$0xf]
    %v171 = vld [vmem:[#allocation6 + $0x1c0] sm:$0xf]
    %v172 = vld [vmem:[#allocation6 + $0x1c4] sm:$0xf]
    %v173 = vld [vmem:[#allocation6 + $0x1c8] sm:$0xf]
    %v174 = vld [vmem:[#allocation6 + $0x1cc] sm:$0xf]
    %v175 = vld [vmem:[#allocation6 + $0x1d0] sm:$0xf]
    %v176 = vld [vmem:[#allocation6 + $0x1d4] sm:$0xf]
    %v177 = vld [vmem:[#allocation6 + $0x1d8] sm:$0xf]
    %v178 = vld [vmem:[#allocation6 + $0x1dc] sm:$0xf]
    %v179 = vld [vmem:[#allocation6 + $0x1e0] sm:$0xf]
    %v180 = vld [vmem:[#allocation6 + $0x1e4] sm:$0xf]
    %v181 = vld [vmem:[#allocation6 + $0x1e8] sm:$0xf]
    %v182 = vld [vmem:[#allocation6 + $0x1ec] sm:$0xf]
    %v183 = vld [vmem:[#allocation6 + $0x1f0] sm:$0xf]
    %v184 = vld [vmem:[#allocation6 + $0x1f4] sm:$0xf]
    %v185 = vld [vmem:[#allocation6 + $0x1f8] sm:$0xf]
    %v186 = vld [vmem:[#allocation6 + $0x1fc] sm:$0xf]
    %v187 = vld [vmem:[%s2] sm:$0x1]
    %v189 = vlaneseq
    %v190 = vshrl.u32 %v189, 7
    %v191 = vsub.s32 0, %v190
    %v192 = vrot.slane %v187, %v191
    %v202 = vunpack.c.l.b16 %v51
    %v203 = vunpack.c.h.b16 %v51
    %v204 = vunpack.c.l.b16 %v52
    %v205 = vunpack.c.h.b16 %v52
    %v206 = vunpack.c.l.b16 %v53
    %v207 = vunpack.c.h.b16 %v53
    %v208 = vunpack.c.l.b16 %v54
    %v209 = vunpack.c.h.b16 %v54
    %v210 = vunpack.c.l.b16 %v55
    %v211 = vunpack.c.h.b16 %v55
    %v212 = vunpack.c.l.b16 %v56
    %v213 = vunpack.c.h.b16 %v56
    %v214 = vunpack.c.l.b16 %v57
    %v215 = vunpack.c.h.b16 %v57
    %v216 = vunpack.c.l.b16 %v58
    %v217 = vunpack.c.h.b16 %v58
    %v218 = vpack.c.b16 %v210, %v202
    %v219 = vpack.c.b16 %v211, %v203
    %v220 = vpack.c.b16 %v212, %v204
    %v221 = vpack.c.b16 %v213, %v205
    %v222 = vpack.c.b16 %v214, %v206
    %v223 = vpack.c.b16 %v215, %v207
    %v224 = vpack.c.b16 %v216, %v208
    %v225 = vpack.c.b16 %v217, %v209
    %v362 = vunpack.c.l.b16 %v59
    %v363 = vunpack.c.l.b16 %v60
    %v364 = vunpack.c.l.b16 %v61
    %v365 = vunpack.c.l.b16 %v62
    %v366 = vunpack.c.l.b16 %v63
    %v367 = vunpack.c.l.b16 %v64
    %v368 = vunpack.c.l.b16 %v65
    %v369 = vunpack.c.l.b16 %v66
    %v370 = vunpack.c.l.b16 %v67
    %v371 = vunpack.c.l.b16 %v68
    %v372 = vunpack.c.l.b16 %v69
    %v373 = vunpack.c.l.b16 %v70
    %v374 = vunpack.c.l.b16 %v71
    %v375 = vunpack.c.l.b16 %v72
    %v376 = vunpack.c.l.b16 %v73
    %v377 = vunpack.c.l.b16 %v74
    %v378 = vunpack.c.l.b16 %v75
    %v379 = vunpack.c.l.b16 %v76
    %v380 = vunpack.c.l.b16 %v77
    %v381 = vunpack.c.l.b16 %v78
    %v382 = vunpack.c.l.b16 %v79
    %v383 = vunpack.c.l.b16 %v80
    %v384 = vunpack.c.l.b16 %v81
    %v385 = vunpack.c.l.b16 %v82
    %v386 = vunpack.c.l.b16 %v83
    %v387 = vunpack.c.l.b16 %v84
    %v388 = vunpack.c.l.b16 %v85
    %v389 = vunpack.c.l.b16 %v86
    %v390 = vunpack.c.l.b16 %v87
    %v391 = vunpack.c.l.b16 %v88
    %v392 = vunpack.c.l.b16 %v89
    %v393 = vunpack.c.l.b16 %v90
    %v394 = vunpack.c.l.b16 %v91
    %v395 = vunpack.c.l.b16 %v92
    %v396 = vunpack.c.l.b16 %v93
    %v397 = vunpack.c.l.b16 %v94
    %v398 = vunpack.c.l.b16 %v95
    %v399 = vunpack.c.l.b16 %v96
    %v400 = vunpack.c.l.b16 %v97
    %v401 = vunpack.c.l.b16 %v98
    %v402 = vunpack.c.l.b16 %v99
    %v403 = vunpack.c.l.b16 %v100
    %v404 = vunpack.c.l.b16 %v101
    %v405 = vunpack.c.l.b16 %v102
    %v406 = vunpack.c.l.b16 %v103
    %v407 = vunpack.c.l.b16 %v104
    %v408 = vunpack.c.l.b16 %v105
    %v409 = vunpack.c.l.b16 %v106
    %v410 = vunpack.c.l.b16 %v107
    %v411 = vunpack.c.l.b16 %v108
    %v412 = vunpack.c.l.b16 %v109
    %v413 = vunpack.c.l.b16 %v110
    %v414 = vunpack.c.l.b16 %v111
    %v415 = vunpack.c.l.b16 %v112
    %v416 = vunpack.c.l.b16 %v113
    %v417 = vunpack.c.l.b16 %v114
    %v418 = vunpack.c.l.b16 %v115
    %v419 = vunpack.c.l.b16 %v116
    %v420 = vunpack.c.l.b16 %v117
    %v421 = vunpack.c.l.b16 %v118
    %v422 = vunpack.c.l.b16 %v119
    %v423 = vunpack.c.l.b16 %v120
    %v424 = vunpack.c.l.b16 %v121
    %v425 = vunpack.c.l.b16 %v122
    %v426 = vunpack.c.l.b16 %v123
    %v427 = vunpack.c.l.b16 %v124
    %v428 = vunpack.c.l.b16 %v125
    %v429 = vunpack.c.l.b16 %v126
    %v430 = vunpack.c.l.b16 %v127
    %v431 = vunpack.c.l.b16 %v128
    %v432 = vunpack.c.l.b16 %v129
    %v433 = vunpack.c.l.b16 %v130
    %v434 = vunpack.c.l.b16 %v131
    %v435 = vunpack.c.l.b16 %v132
    %v436 = vunpack.c.l.b16 %v133
    %v437 = vunpack.c.l.b16 %v134
    %v438 = vunpack.c.l.b16 %v135
    %v439 = vunpack.c.l.b16 %v136
    %v440 = vunpack.c.l.b16 %v137
    %v441 = vunpack.c.l.b16 %v138
    %v442 = vunpack.c.l.b16 %v139
    %v443 = vunpack.c.l.b16 %v140
    %v444 = vunpack.c.l.b16 %v141
    %v445 = vunpack.c.l.b16 %v142
    %v446 = vunpack.c.l.b16 %v143
    %v447 = vunpack.c.l.b16 %v144
    %v448 = vunpack.c.l.b16 %v145
    %v449 = vunpack.c.l.b16 %v146
    %v450 = vunpack.c.l.b16 %v147
    %v451 = vunpack.c.l.b16 %v148
    %v452 = vunpack.c.l.b16 %v149
    %v453 = vunpack.c.l.b16 %v150
    %v454 = vunpack.c.l.b16 %v151
    %v455 = vunpack.c.l.b16 %v152
    %v456 = vunpack.c.l.b16 %v153
    %v457 = vunpack.c.l.b16 %v154
    %v458 = vunpack.c.l.b16 %v155
    %v459 = vunpack.c.l.b16 %v156
    %v460 = vunpack.c.l.b16 %v157
    %v461 = vunpack.c.l.b16 %v158
    %v462 = vunpack.c.l.b16 %v159
    %v463 = vunpack.c.l.b16 %v160
    %v464 = vunpack.c.l.b16 %v161
    %v465 = vunpack.c.l.b16 %v162
    %v466 = vunpack.c.l.b16 %v163
    %v467 = vunpack.c.l.b16 %v164
    %v468 = vunpack.c.l.b16 %v165
    %v469 = vunpack.c.l.b16 %v166
    %v470 = vunpack.c.l.b16 %v167
    %v471 = vunpack.c.l.b16 %v168
    %v472 = vunpack.c.l.b16 %v169
    %v473 = vunpack.c.l.b16 %v170
    %v474 = vunpack.c.l.b16 %v171
    %v475 = vunpack.c.l.b16 %v172
    %v476 = vunpack.c.l.b16 %v173
    %v477 = vunpack.c.l.b16 %v174
    %v478 = vunpack.c.l.b16 %v175
    %v479 = vunpack.c.l.b16 %v176
    %v480 = vunpack.c.l.b16 %v177
    %v481 = vunpack.c.l.b16 %v178
    %v482 = vunpack.c.l.b16 %v179
    %v483 = vunpack.c.l.b16 %v180
    %v484 = vunpack.c.l.b16 %v181
    %v485 = vunpack.c.l.b16 %v182
    %v486 = vunpack.c.l.b16 %v183
    %v487 = vunpack.c.l.b16 %v184
    %v488 = vunpack.c.l.b16 %v185
    %v489 = vunpack.c.l.b16 %v186
    %v490 = vpack.c.b16 %v363, %v362
    %v491 = vpack.c.b16 %v365, %v364
    %v492 = vpack.c.b16 %v367, %v366
    %v493 = vpack.c.b16 %v369, %v368
    %v494 = vpack.c.b16 %v371, %v370
    %v495 = vpack.c.b16 %v373, %v372
    %v496 = vpack.c.b16 %v375, %v374
    %v497 = vpack.c.b16 %v377, %v376
    %v498 = vpack.c.b16 %v379, %v378
    %v499 = vpack.c.b16 %v381, %v380
    %v500 = vpack.c.b16 %v383, %v382
    %v501 = vpack.c.b16 %v385, %v384
    %v502 = vpack.c.b16 %v387, %v386
    %v503 = vpack.c.b16 %v389, %v388
    %v504 = vpack.c.b16 %v391, %v390
    %v505 = vpack.c.b16 %v393, %v392
    %v506 = vpack.c.b16 %v395, %v394
    %v507 = vpack.c.b16 %v397, %v396
    %v508 = vpack.c.b16 %v399, %v398
    %v509 = vpack.c.b16 %v401, %v400
    %v510 = vpack.c.b16 %v403, %v402
    %v511 = vpack.c.b16 %v405, %v404
    %v512 = vpack.c.b16 %v407, %v406
    %v513 = vpack.c.b16 %v409, %v408
    %v514 = vpack.c.b16 %v411, %v410
    %v515 = vpack.c.b16 %v413, %v412
    %v516 = vpack.c.b16 %v415, %v414
    %v517 = vpack.c.b16 %v417, %v416
    %v518 = vpack.c.b16 %v419, %v418
    %v519 = vpack.c.b16 %v421, %v420
    %v520 = vpack.c.b16 %v423, %v422
    %v521 = vpack.c.b16 %v425, %v424
    %v522 = vpack.c.b16 %v427, %v426
    %v523 = vpack.c.b16 %v429, %v428
    %v524 = vpack.c.b16 %v431, %v430
    %v525 = vpack.c.b16 %v433, %v432
    %v526 = vpack.c.b16 %v435, %v434
    %v527 = vpack.c.b16 %v437, %v436
    %v528 = vpack.c.b16 %v439, %v438
    %v529 = vpack.c.b16 %v441, %v440
    %v530 = vpack.c.b16 %v443, %v442
    %v531 = vpack.c.b16 %v445, %v444
    %v532 = vpack.c.b16 %v447, %v446
    %v533 = vpack.c.b16 %v449, %v448
    %v534 = vpack.c.b16 %v451, %v450
    %v535 = vpack.c.b16 %v453, %v452
    %v536 = vpack.c.b16 %v455, %v454
    %v537 = vpack.c.b16 %v457, %v456
    %v538 = vpack.c.b16 %v459, %v458
    %v539 = vpack.c.b16 %v461, %v460
    %v540 = vpack.c.b16 %v463, %v462
    %v541 = vpack.c.b16 %v465, %v464
    %v542 = vpack.c.b16 %v467, %v466
    %v543 = vpack.c.b16 %v469, %v468
    %v544 = vpack.c.b16 %v471, %v470
    %v545 = vpack.c.b16 %v473, %v472
    %v546 = vpack.c.b16 %v475, %v474
    %v547 = vpack.c.b16 %v477, %v476
    %v548 = vpack.c.b16 %v479, %v478
    %v549 = vpack.c.b16 %v481, %v480
    %v550 = vpack.c.b16 %v483, %v482
    %v551 = vpack.c.b16 %v485, %v484
    %v552 = vpack.c.b16 %v487, %v486
    %v553 = vpack.c.b16 %v489, %v488
    %618 = vmatprep.subr.bf16.mxu0 0
    %619 = vmatpush1.bf16.msra.mxu0 %v497
    %620 = vmatprep.subr.bf16.mxu0 0
    %621 = vmatpush1.bf16.msra.mxu0 %v496
    %622 = vmatprep.subr.bf16.mxu0 0
    %623 = vmatpush1.bf16.msra.mxu0 %v495
    %624 = vmatprep.subr.bf16.mxu0 0
    %625 = vmatpush1.bf16.msra.mxu0 %v494
    %626 = vmatprep.subr.bf16.mxu0 0
    %627 = vmatpush1.bf16.msra.mxu0 %v493
    %628 = vmatprep.subr.bf16.mxu0 0
    %629 = vmatpush1.bf16.msra.mxu0 %v492
    %630 = vmatprep.subr.bf16.mxu0 0
    %631 = vmatpush1.bf16.msra.mxu0 %v491
    %632 = vmatprep.subr.bf16.mxu0 0
    %633 = vmatpush1.bf16.msra.mxu0 %v490
    %634 = vmatprep.subr.bf16.mxu0 0
    %635 = vmatpush2.bf16.msra.mxu0 %v505
    %636 = vmatprep.subr.bf16.mxu0 0
    %637 = vmatpush2.bf16.msra.mxu0 %v504
    %638 = vmatprep.subr.bf16.mxu0 0
    %639 = vmatpush2.bf16.msra.mxu0 %v503
    %640 = vmatprep.subr.bf16.mxu0 0
    %641 = vmatpush2.bf16.msra.mxu0 %v502
    %642 = vmatprep.subr.bf16.mxu0 0
    %643 = vmatpush2.bf16.msra.mxu0 %v501
    %644 = vmatprep.subr.bf16.mxu0 0
    %645 = vmatpush2.bf16.msra.mxu0 %v500
    %646 = vmatprep.subr.bf16.mxu0 0
    %647 = vmatpush2.bf16.msra.mxu0 %v499
    %648 = vmatprep.subr.bf16.mxu0 0
    %649 = vmatpush2.bf16.msra.mxu0 %v498
    %650 = vmatprep.mubr.bf16.mxu0 %v219
    %651 = vmatmul.mubr.bf16.gmra.mxu0 %v218
    %v652 = vpop.f32.mrf.mxu0
    %v653 = vadd.f32 %v192, %v652
    %v654 = vpop.f32.mrf.mxu0
    %v655 = vpop.f32.mrf.mxu0
    %v656 = vadd.f32 %v192, %v655
    %v657 = vpop.f32.mrf.mxu0
    %658 = vdwg.mxu0
    %659 = vmatprep.subr.bf16.mxu0 0
    %660 = vmatpush1.bf16.msra.mxu0 %v513
    %661 = vmatprep.subr.bf16.mxu0 0
    %662 = vmatpush1.bf16.msra.mxu0 %v512
    %663 = vmatprep.subr.bf16.mxu0 0
    %664 = vmatpush1.bf16.msra.mxu0 %v511
    %665 = vmatprep.subr.bf16.mxu0 0
    %666 = vmatpush1.bf16.msra.mxu0 %v510
    %667 = vmatprep.subr.bf16.mxu0 0
    %668 = vmatpush1.bf16.msra.mxu0 %v509
    %669 = vmatprep.subr.bf16.mxu0 0
    %670 = vmatpush1.bf16.msra.mxu0 %v508
    %671 = vmatprep.subr.bf16.mxu0 0
    %672 = vmatpush1.bf16.msra.mxu0 %v507
    %673 = vmatprep.subr.bf16.mxu0 0
    %674 = vmatpush1.bf16.msra.mxu0 %v506
    %675 = vmatprep.subr.bf16.mxu0 0
    %676 = vmatpush2.bf16.msra.mxu0 %v521
    %677 = vmatprep.subr.bf16.mxu0 0
    %678 = vmatpush2.bf16.msra.mxu0 %v520
    %679 = vmatprep.subr.bf16.mxu0 0
    %680 = vmatpush2.bf16.msra.mxu0 %v519
    %681 = vmatprep.subr.bf16.mxu0 0
    %682 = vmatpush2.bf16.msra.mxu0 %v518
    %683 = vmatprep.subr.bf16.mxu0 0
    %684 = vmatpush2.bf16.msra.mxu0 %v517
    %685 = vmatprep.subr.bf16.mxu0 0
    %686 = vmatpush2.bf16.msra.mxu0 %v516
    %687 = vmatprep.subr.bf16.mxu0 0
    %688 = vmatpush2.bf16.msra.mxu0 %v515
    %689 = vmatprep.subr.bf16.mxu0 0
    %690 = vmatpush2.bf16.msra.mxu0 %v514
    %691 = vmatprep.mubr.bf16.mxu0 %v221
    %692 = vmatmul.mubr.bf16.gmra.mxu0 %v220
    %v693 = vpop.f32.mrf.mxu0
    %v694 = vadd.f32 %v653, %v693
    %v695 = vpop.f32.mrf.mxu0
    %v696 = vpop.f32.mrf.mxu0
    %v697 = vadd.f32 %v656, %v696
    %v698 = vpop.f32.mrf.mxu0
    %699 = vdwg.mxu0
    %700 = vmatprep.subr.bf16.mxu0 0
    %701 = vmatpush1.bf16.msra.mxu0 %v529
    %702 = vmatprep.subr.bf16.mxu0 0
    %703 = vmatpush1.bf16.msra.mxu0 %v528
    %704 = vmatprep.subr.bf16.mxu0 0
    %705 = vmatpush1.bf16.msra.mxu0 %v527
    %706 = vmatprep.subr.bf16.mxu0 0
    %707 = vmatpush1.bf16.msra.mxu0 %v526
    %708 = vmatprep.subr.bf16.mxu0 0
    %709 = vmatpush1.bf16.msra.mxu0 %v525
    %710 = vmatprep.subr.bf16.mxu0 0
    %711 = vmatpush1.bf16.msra.mxu0 %v524
    %712 = vmatprep.subr.bf16.mxu0 0
    %713 = vmatpush1.bf16.msra.mxu0 %v523
    %714 = vmatprep.subr.bf16.mxu0 0
    %715 = vmatpush1.bf16.msra.mxu0 %v522
    %716 = vmatprep.subr.bf16.mxu0 0
    %717 = vmatpush2.bf16.msra.mxu0 %v537
    %718 = vmatprep.subr.bf16.mxu0 0
    %719 = vmatpush2.bf16.msra.mxu0 %v536
    %720 = vmatprep.subr.bf16.mxu0 0
    %721 = vmatpush2.bf16.msra.mxu0 %v535
    %722 = vmatprep.subr.bf16.mxu0 0
    %723 = vmatpush2.bf16.msra.mxu0 %v534
    %724 = vmatprep.subr.bf16.mxu0 0
    %725 = vmatpush2.bf16.msra.mxu0 %v533
    %726 = vmatprep.subr.bf16.mxu0 0
    %727 = vmatpush2.bf16.msra.mxu0 %v532
    %728 = vmatprep.subr.bf16.mxu0 0
    %729 = vmatpush2.bf16.msra.mxu0 %v531
    %730 = vmatprep.subr.bf16.mxu0 0
    %731 = vmatpush2.bf16.msra.mxu0 %v530
    %732 = vmatprep.mubr.bf16.mxu0 %v223
    %733 = vmatmul.mubr.bf16.gmra.mxu0 %v222
    %v734 = vpop.f32.mrf.mxu0
    %v735 = vadd.f32 %v694, %v734
    %v736 = vpop.f32.mrf.mxu0
    %v737 = vpop.f32.mrf.mxu0
    %v738 = vadd.f32 %v697, %v737
    %v739 = vpop.f32.mrf.mxu0
    %740 = vdwg.mxu0
    %741 = vmatprep.subr.bf16.mxu0 0
    %742 = vmatpush1.bf16.msra.mxu0 %v545
    %743 = vmatprep.subr.bf16.mxu0 0
    %744 = vmatpush1.bf16.msra.mxu0 %v544
    %745 = vmatprep.subr.bf16.mxu0 0
    %746 = vmatpush1.bf16.msra.mxu0 %v543
    %747 = vmatprep.subr.bf16.mxu0 0
    %748 = vmatpush1.bf16.msra.mxu0 %v542
    %749 = vmatprep.subr.bf16.mxu0 0
    %750 = vmatpush1.bf16.msra.mxu0 %v541
    %751 = vmatprep.subr.bf16.mxu0 0
    %752 = vmatpush1.bf16.msra.mxu0 %v540
    %753 = vmatprep.subr.bf16.mxu0 0
    %754 = vmatpush1.bf16.msra.mxu0 %v539
    %755 = vmatprep.subr.bf16.mxu0 0
    %756 = vmatpush1.bf16.msra.mxu0 %v538
    %757 = vmatprep.subr.bf16.mxu0 0
    %758 = vmatpush2.bf16.msra.mxu0 %v553
    %759 = vmatprep.subr.bf16.mxu0 0
    %760 = vmatpush2.bf16.msra.mxu0 %v552
    %761 = vmatprep.subr.bf16.mxu0 0
    %762 = vmatpush2.bf16.msra.mxu0 %v551
    %763 = vmatprep.subr.bf16.mxu0 0
    %764 = vmatpush2.bf16.msra.mxu0 %v550
    %765 = vmatprep.subr.bf16.mxu0 0
    %766 = vmatpush2.bf16.msra.mxu0 %v549
    %767 = vmatprep.subr.bf16.mxu0 0
    %768 = vmatpush2.bf16.msra.mxu0 %v548
    %769 = vmatprep.subr.bf16.mxu0 0
    %770 = vmatpush2.bf16.msra.mxu0 %v547
    %771 = vmatprep.subr.bf16.mxu0 0
    %772 = vmatpush2.bf16.msra.mxu0 %v546
    %773 = vmatprep.mubr.bf16.mxu0 %v225
    %774 = vmatmul.mubr.bf16.gmra.mxu0 %v224
    %v775 = vpop.f32.mrf.mxu0
    %v776 = vadd.f32 %v735, %v775
    %v777 = vpop.f32.mrf.mxu0
    %v778 = vpop.f32.mrf.mxu0
    %v779 = vadd.f32 %v738, %v778
    %v780 = vpop.f32.mrf.mxu0
    %781 = vdwg.mxu0
    %v782 = vmax.f32 %v776, 0.0
    %v783 = vmax.f32 %v779, 0.0
    %v784 = vld [vmem:[%s3] sm:$0x1]
    %v786 = vlaneseq
    %v787 = vshrl.u32 %v786, 7
    %v788 = vsub.s32 0, %v787
    %v789 = vrot.slane %v784, %v788
    %v791 = vmul.f32 %v782, %v789
    %v792 = vmul.f32 %v783, %v789
    %793 = vadd.xlane.f32.xlu0 %v791
    %v794 = vpop.xlane.xlu0 %793
    %795 = vadd.xlane.f32.xlu0 %v792
    %v796 = vpop.xlane.xlu0 %795
    %s797 = sld [smem:[#allocation2]]
    %v798 = vstv %s797
    %v799 = vadd.f32 %v794, %v798
    %v800 = vadd.f32 %v796, %v798
    %v801 = vxor.u32 %v799, 2147483648
    %v802 = vxor.u32 %v800, 2147483648
    %v803 = vmul.f32 %v801, 1.442695
    %v804 = vpow.pop %v803
    %v805 = vmul.f32 %v802, 1.442695
    %v806 = vpow.pop %v805
    %v807 = vadd.f32 %v804, 1.0
    %v808 = vadd.f32 %v806, 1.0
    %v809 = vrcp.pop %v807
    %v810 = vmul.f32 1.0, %v809
    %v811 = vrcp.pop %v808
    %v812 = vmul.f32 1.0, %v811
    %v815 = vlaneseq
    %v816 = vand.u32 %v815, 127
    %v817 = vlaneseq
    %v818 = vshrl.u32 %v817, 7
    %v819 = vsub.s32 %v816, %v818
    %v820 = vrot.slane %v810, %v819
    %v821 = vadd.s32 %v816, 4294967288
    %v822 = vlaneseq
    %v823 = vshrl.u32 %v822, 7
    %v824 = vsub.s32 %v821, %v823
    %v825 = vrot.slane %v812, %v824
    %vm826 = vcmask 130112
    %v827 = vsel %vm826, %v825, %v820
    %vm829 = vcmask 122880
    %830 = vst.msk [vmem:[#allocation8] sm:$0x1] %vm829, %v827
    // Predicated region
    $region30: #{tpu_custom_call.1} parent=1 // pred_check
      _
    $region31: #{tpu_custom_call.1} parent=1 // pred_check_branch
      %832 = sbr.rel (0) target = $region33
    $region32: #{tpu_custom_call.1} parent=1 // pred_region
      %s834 = ssub.s32 16, 16
      %835 = vsyncadd [#allocation5], %s834
      %s837 = sshll.u32 [#allocation8], 4
      %s838 = int_to_ptr.vmem [resolvable:$true] %s837
      %840 = dma.vmem_to_hbm [thread:$0]  %s838, 16, %s5, [#allocation5]
    $region33: #{tpu_custom_call.1} parent=1 // pred_fallthru
      _
    // Predicated region
    $region34: #{tpu_custom_call.1} parent=1 // pred_check
      _
    $region35: #{tpu_custom_call.1} parent=1 // pred_check_branch
      %842 = sbr.rel (0) target = $region37
    $region36: #{tpu_custom_call.1} parent=1 // pred_region
      %843 = dma.done [#allocation5], 16
    $region37: #{tpu_custom_call.1} parent=1 // pred_fallthru
      _
    %844 = vsyncpa [#allocation4], 1
    %845 = vsyncpa [#allocation7], 1
    %846 = vsyncpa [#allocation5], 1

</llo_original>
